<compile_context>
chip_gen: v7x
topology: tpu7x:2x2x1
jax: 0.10.0
libtpu: 0.0.40
codegen_flags: <defaults>
</compile_context>

<pallas_src>
import math

import jax
import jax.numpy as jnp
from jax.experimental import pallas as pl
from jax.experimental.pallas import tpu as pltpu


def _round_up(x, m):
    return ((x + m - 1) // m) * m


def _cdiv(a, b):
    return (a + b - 1) // b


# --------------------------------------------------------------------------- #
# Kernel
# --------------------------------------------------------------------------- #
def _build_mlp_kernel(num_hidden, has_output, compute_dtype):
    """Whole MLP on one (tile, packed_in) batch tile, everything in VMEM.

    Ref order: x, (w0, b0), ..., (w_{n-1}, b_{n-1}), [w_out, b_out], out.
    Weights are (in, out) with eval-mode BN folded in (block-diagonal when the
    batch is lane-packed); biases are (1, out) f32.
    """

    def kernel(*refs):
        x_ref = refs[0]
        o_ref = refs[-1]
        params = refs[1:-1]

        h = x_ref[...].astype(compute_dtype)              # bf16 straight into the MXU
        for layer in range(num_hidden):
            w = params[2 * layer][...]                    # (in, out), BN folded
            b = params[2 * layer + 1][...]                # (1, out) f32
            y = jnp.dot(h, w, preferred_element_type=jnp.float32) + b
            h = jnp.maximum(y, 0.0)                       # ReLU (f32); Dropout = identity
            if layer + 1 < num_hidden or has_output:
                h = h.astype(compute_dtype)               # bf16 for the next MXU op

        if has_output:
            w = params[2 * num_hidden][...]               # (in, p) block-diag output layer
            b = params[2 * num_hidden + 1][...]           # (1, p) f32
            y = jnp.dot(h, w, preferred_element_type=jnp.float32) + b
            o_ref[...] = y.astype(o_ref.dtype)
        else:
            o_ref[...] = h.astype(o_ref.dtype)

    return kernel


# --------------------------------------------------------------------------- #
# Parameter folding / packing
# --------------------------------------------------------------------------- #
def _fold_bn(layer):
    """Fold eval-mode BatchNorm1d into the preceding Linear. Returns (W', b')."""
    scale = layer["gamma"] / jnp.sqrt(layer["running_var"] + layer["eps"])
    shift = layer["beta"] - layer["running_mean"] * scale
    w_t = layer["w"].T * scale[None, :]        # (in, out)
    b = layer["b"] * scale + shift             # (out,)
    return w_t, b


def _block_diag(w, p):
    """(in, out) -> (p*in, p*out) block-diagonal with p copies of w."""
    if p == 1:
        return w
    return jnp.kron(jnp.eye(p, dtype=w.dtype), w)


# --------------------------------------------------------------------------- #
# Wrapper
# --------------------------------------------------------------------------- #
def mlp_forward(x, hidden_layers, out_layer, *,
                compute_dtype=jnp.bfloat16,
                max_tile_rows=4096,
                vmem_budget_bytes=8 << 20):
    """Fused MLP forward.  x: (B, input_dim), f32 or bf16."""
    B, D = x.shape
    dims = [D] + [l["w"].shape[0] for l in hidden_layers]
    has_output = out_layer is not None
    out_dim = 1 if has_output else dims[-1]

    # Lane-packing factor: 8 batch rows per 128-lane row when every layer is
    # narrow enough that the block-diagonal weights stay small.
    p = 8 if 8 * max(dims + [out_dim]) <= 2048 else 1

    padded_B = _round_up(B, p)
    if padded_B != B:
        x = jnp.pad(x, ((0, padded_B - B), (0, 0)))
    rows = padded_B // p
    x = x.reshape(rows, p * D)                            # free, contiguous reshape

    # Fold BN + build (block-diagonal) kernel params.  (In production this is
    # done once at load time, not per call.)
    kern_params = []
    packed_widths = []
    for layer in hidden_layers:
        w_t, b = _fold_bn(layer)
        kern_params.append(_block_diag(w_t, p).astype(compute_dtype))
        kern_params.append(jnp.tile(b.reshape(1, -1), (1, p)).astype(jnp.float32))
        packed_widths.append(p * b.shape[0])
    if has_output:
        kern_params.append(_block_diag(out_layer["w"].T, p).astype(compute_dtype))
        kern_params.append(
            jnp.tile(out_layer["b"].reshape(1, 1), (1, p)).astype(jnp.float32))
        out_cols = p
    else:
        out_cols = packed_widths[-1]

    # Batch tile: as large as a conservative VMEM estimate allows.
    # Per-row bytes: x (double-buffered, compute dtype) + f32 & compute-dtype
    # activation copies per layer + f32 output (double-buffered), lane-padded
    # to 128.  The 8 MiB budget stays under every generation's default scoped
    # VMEM (16 MiB v5e / 32 MiB v6e+v7x); if embed_dims grow, raise the budget
    # and set vmem_limit_bytes in CompilerParams.
    itemsize = jnp.dtype(compute_dtype).itemsize
    per_row = 2 * itemsize * _round_up(p * D, 128)
    for w_pack in packed_widths:
        per_row += (4 + itemsize) * _round_up(w_pack, 128)
    per_row += 2 * 4 * _round_up(out_cols, 128)

    tile = max(8, min(max_tile_rows, vmem_budget_bytes // per_row))
    tile = (tile // 8) * 8
    if tile >= rows:
        tile = rows                                        # single full-size block
    else:
        # Balance block sizes across the grid so both v7x TensorCores get work.
        n_tiles = _cdiv(rows, tile)
        tile = _round_up(_cdiv(rows, n_tiles), 8)
    grid = (_cdiv(rows, tile),)                            # last block may be partial

    in_specs = [pl.BlockSpec((tile, p * D), lambda i: (i, 0))]
    for prm in kern_params:
        in_specs.append(pl.BlockSpec(prm.shape, lambda i: (0, 0)))   # replicated

    kernel = _build_mlp_kernel(len(hidden_layers), has_output, compute_dtype)

    out = pl.pallas_call(
        kernel,
        out_shape=jax.ShapeDtypeStruct((rows, out_cols), jnp.float32),
        grid_spec=pl.GridSpec(
            grid=grid,
            in_specs=in_specs,
            out_specs=pl.BlockSpec((tile, out_cols), lambda i: (i, 0)),
        ),
        compiler_params=pltpu.CompilerParams(
            dimension_semantics=("parallel",),             # shard batch tiles over TCs
        ),
    )(x, *kern_params)

    out = out.reshape(padded_B, out_cols // p)             # free un-packing reshape
    return out[:B]


# --------------------------------------------------------------------------- #
# Init (torch defaults) + pure-JAX reference
# --------------------------------------------------------------------------- #
def init_mlp_params(key, input_dim, embed_dims, output_layer=True):
    """Torch-default init.  Linear: U(-1/sqrt(fan_in), 1/sqrt(fan_in));
    BatchNorm1d: gamma=1, beta=0, running_mean=0, running_var=1, eps=1e-5."""
    eps = 1e-5
    hidden = []
    in_dim = input_dim
    for embed_dim in embed_dims:
        key, kw, kb = jax.random.split(key, 3)
        bound = 1.0 / math.sqrt(in_dim)
        hidden.append({
            "w": jax.random.uniform(kw, (embed_dim, in_dim), jnp.float32, -bound, bound),
            "b": jax.random.uniform(kb, (embed_dim,), jnp.float32, -bound, bound),
            "gamma": jnp.ones((embed_dim,), jnp.float32),
            "beta": jnp.zeros((embed_dim,), jnp.float32),
            "running_mean": jnp.zeros((embed_dim,), jnp.float32),
            "running_var": jnp.ones((embed_dim,), jnp.float32),
            "eps": eps,
        })
        in_dim = embed_dim

    out = None
    if output_layer:
        key, kw, kb = jax.random.split(key, 3)
        bound = 1.0 / math.sqrt(in_dim)
        out = {
            "w": jax.random.uniform(kw, (1, in_dim), jnp.float32, -bound, bound),
            "b": jax.random.uniform(kb, (1,), jnp.float32, -bound, bound),
        }
    return hidden, out


def mlp_reference(x, hidden_layers, out_layer):
    """f32 reference with the original (unfolded) torch eval-mode semantics."""
    h = x.astype(jnp.float32)
    for layer in hidden_layers:
        y = h @ layer["w"].T + layer["b"]
        scale = layer["gamma"] / jnp.sqrt(layer["running_var"] + layer["eps"])
        shift = layer["beta"] - layer["running_mean"] * scale
        h = jnp.maximum(y * scale + shift, 0.0)
    if out_layer is not None:
        h = h @ out_layer["w"].T + out_layer["b"]
    return h


# --------------------------------------------------------------------------- #
if __name__ == "__main__":
    key = jax.random.PRNGKey(0)
    batch = 8
    input_dim = 16
    embed_dims = (32, 16)
    dropout = 0.2                      # identity in eval-mode forward

    key, kx, kp = jax.random.split(key, 3)
    x = jax.random.normal(kx, (batch, input_dim), jnp.float32)
    hidden_layers, out_layer = init_mlp_params(kp, input_dim, embed_dims,
                                               output_layer=True)

    # bf16 at the boundary (as the upstream embedding would emit): halves the
    # dominant HBM stream.  f32 x would also be accepted and cast in-kernel.
    x_bf16 = x.astype(jnp.bfloat16)

    out = mlp_forward(x_bf16, hidden_layers, out_layer)
    out = jax.block_until_ready(out)

    ref = mlp_reference(x_bf16, hidden_layers, out_layer)
    assert out.shape == (batch, 1), out.shape
    max_err = float(jnp.max(jnp.abs(out - ref)))
    assert max_err < 5e-2, f"mismatch vs reference: max abs err {max_err}"
    print("KERNEL_OK")
</pallas_src>

<mosaic_0001>
module attributes {stable_mosaic.version = 11 : i64} {
  func.func @kernel(%arg0: i32, %arg1: memref<1x128xbf16, #tpu.memory_space<vmem>>, %arg2: memref<128x256xbf16, #tpu.memory_space<vmem>>, %arg3: memref<1x256xf32, #tpu.memory_space<vmem>>, %arg4: memref<256x128xbf16, #tpu.memory_space<vmem>>, %arg5: memref<1x128xf32, #tpu.memory_space<vmem>>, %arg6: memref<128x8xbf16, #tpu.memory_space<vmem>>, %arg7: memref<1x8xf32, #tpu.memory_space<vmem>>, %arg8: memref<1x8xf32, #tpu.memory_space<vmem>>) attributes {dimension_semantics = [#tpu.dimension_semantics<parallel>], iteration_bounds = array<i64: 1>, scalar_prefetch = 0 : i64, scratch_operands = 0 : i64, tpu.core_type = #tpu.core_type<tc>, window_params = [{transform_indices = @transform_0, window_bounds = array<i64: 1, 128>}, {pipeline_mode = #tpu.pipeline_mode<synchronous>, transform_indices = @transform_1, window_bounds = array<i64: 128, 256>}, {pipeline_mode = #tpu.pipeline_mode<synchronous>, transform_indices = @transform_2, window_bounds = array<i64: 1, 256>}, {pipeline_mode = #tpu.pipeline_mode<synchronous>, transform_indices = @transform_3, window_bounds = array<i64: 256, 128>}, {pipeline_mode = #tpu.pipeline_mode<synchronous>, transform_indices = @transform_4, window_bounds = array<i64: 1, 128>}, {pipeline_mode = #tpu.pipeline_mode<synchronous>, transform_indices = @transform_5, window_bounds = array<i64: 128, 8>}, {pipeline_mode = #tpu.pipeline_mode<synchronous>, transform_indices = @transform_6, window_bounds = array<i64: 1, 8>}, {transform_indices = @transform_7, window_bounds = array<i64: 1, 8>}]} {
    %c0 = arith.constant 0 : index
    %c0_0 = arith.constant 0 : index
    %0 = vector.load %arg1[%c0, %c0_0] : memref<1x128xbf16, #tpu.memory_space<vmem>>, vector<1x128xbf16>
    %c0_1 = arith.constant 0 : index
    %c0_2 = arith.constant 0 : index
    %1 = vector.load %arg2[%c0_1, %c0_2] : memref<128x256xbf16, #tpu.memory_space<vmem>>, vector<128x256xbf16>
    %c0_3 = arith.constant 0 : index
    %c0_4 = arith.constant 0 : index
    %2 = vector.load %arg3[%c0_3, %c0_4] : memref<1x256xf32, #tpu.memory_space<vmem>>, vector<1x256xf32>
    %cst = arith.constant dense<0.000000e+00> : vector<1x256xf32>
    %3 = tpu.matmul %0, %1, %cst {dimension_numbers = #tpu.dot_dimension_numbers<[1], [0], [0], [1], [0, 0, 1, 1], [], []>} : vector<1x128xbf16>, vector<128x256xbf16>, vector<1x256xf32> -> vector<1x256xf32>
    %4 = arith.addf %3, %2 : vector<1x256xf32>
    %cst_5 = arith.constant 0.000000e+00 : f32
    %5 = vector.broadcast %cst_5 : f32 to vector<1x256xf32>
    %6 = arith.maximumf %4, %5 : vector<1x256xf32>
    %7 = arith.truncf %6 : vector<1x256xf32> to vector<1x256xbf16>
    %c0_6 = arith.constant 0 : index
    %c0_7 = arith.constant 0 : index
    %8 = vector.load %arg4[%c0_6, %c0_7] : memref<256x128xbf16, #tpu.memory_space<vmem>>, vector<256x128xbf16>
    %c0_8 = arith.constant 0 : index
    %c0_9 = arith.constant 0 : index
    %9 = vector.load %arg5[%c0_8, %c0_9] : memref<1x128xf32, #tpu.memory_space<vmem>>, vector<1x128xf32>
    %cst_10 = arith.constant dense<0.000000e+00> : vector<1x128xf32>
    %10 = tpu.matmul %7, %8, %cst_10 {dimension_numbers = #tpu.dot_dimension_numbers<[1], [0], [0], [1], [0, 0, 1, 1], [], []>} : vector<1x256xbf16>, vector<256x128xbf16>, vector<1x128xf32> -> vector<1x128xf32>
    %11 = arith.addf %10, %9 : vector<1x128xf32>
    %cst_11 = arith.constant 0.000000e+00 : f32
    %12 = vector.broadcast %cst_11 : f32 to vector<1x128xf32>
    %13 = arith.maximumf %11, %12 : vector<1x128xf32>
    %14 = arith.truncf %13 : vector<1x128xf32> to vector<1x128xbf16>
    %c0_12 = arith.constant 0 : index
    %c0_13 = arith.constant 0 : index
    %15 = vector.load %arg6[%c0_12, %c0_13] : memref<128x8xbf16, #tpu.memory_space<vmem>>, vector<128x8xbf16>
    %c0_14 = arith.constant 0 : index
    %c0_15 = arith.constant 0 : index
    %16 = vector.load %arg7[%c0_14, %c0_15] : memref<1x8xf32, #tpu.memory_space<vmem>>, vector<1x8xf32>
    %cst_16 = arith.constant dense<0.000000e+00> : vector<1x8xf32>
    %17 = tpu.matmul %14, %15, %cst_16 {dimension_numbers = #tpu.dot_dimension_numbers<[1], [0], [0], [1], [0, 0, 1, 1], [], []>} : vector<1x128xbf16>, vector<128x8xbf16>, vector<1x8xf32> -> vector<1x8xf32>
    %18 = arith.addf %17, %16 : vector<1x8xf32>
    %c0_17 = arith.constant 0 : index
    %c0_18 = arith.constant 0 : index
    %19 = vector.load %arg8[%c0_17, %c0_18] : memref<1x8xf32, #tpu.memory_space<vmem>>, vector<1x8xf32>
    tpu.vector_store %arg8[%c0_17, %c0_18], %18 {strides = array<i32>} : memref<1x8xf32, #tpu.memory_space<vmem>>, vector<1x8xf32>,
    return
  }
  func.func @transform_0(%arg0: i32) -> (i32, i32) {
    %c0_i32 = arith.constant 0 : i32
    %c0_i32_0 = arith.constant 0 : i32
    return %arg0, %c0_i32 : i32, i32
  }
  func.func @transform_1(%arg0: i32) -> (i32, i32) {
    %c0_i32 = arith.constant 0 : i32
    %c0_i32_0 = arith.constant 0 : i32
    %c0_i32_1 = arith.constant 0 : i32
    return %c0_i32, %c0_i32_0 : i32, i32
  }
  func.func @transform_2(%arg0: i32) -> (i32, i32) {
    %c0_i32 = arith.constant 0 : i32
    %c0_i32_0 = arith.constant 0 : i32
    %c0_i32_1 = arith.constant 0 : i32
    return %c0_i32, %c0_i32_0 : i32, i32
  }
  func.func @transform_3(%arg0: i32) -> (i32, i32) {
    %c0_i32 = arith.constant 0 : i32
    %c0_i32_0 = arith.constant 0 : i32
    %c0_i32_1 = arith.constant 0 : i32
    return %c0_i32, %c0_i32_0 : i32, i32
  }
  func.func @transform_4(%arg0: i32) -> (i32, i32) {
    %c0_i32 = arith.constant 0 : i32
    %c0_i32_0 = arith.constant 0 : i32
    %c0_i32_1 = arith.constant 0 : i32
    return %c0_i32, %c0_i32_0 : i32, i32
  }
  func.func @transform_5(%arg0: i32) -> (i32, i32) {
    %c0_i32 = arith.constant 0 : i32
    %c0_i32_0 = arith.constant 0 : i32
    %c0_i32_1 = arith.constant 0 : i32
    return %c0_i32, %c0_i32_0 : i32, i32
  }
  func.func @transform_6(%arg0: i32) -> (i32, i32) {
    %c0_i32 = arith.constant 0 : i32
    %c0_i32_0 = arith.constant 0 : i32
    %c0_i32_1 = arith.constant 0 : i32
    return %c0_i32, %c0_i32_0 : i32, i32
  }
  func.func @transform_7(%arg0: i32) -> (i32, i32) {
    %c0_i32 = arith.constant 0 : i32
    %c0_i32_0 = arith.constant 0 : i32
    return %arg0, %c0_i32 : i32, i32
  }
}

</mosaic_0001>

<llo_original>
// kernel: tpu_custom_call.1
$region0: #{tpu_custom_call.1}
  #allocation0 [shape = 'u32[]', space=smem, size = 0x4, offset = 0x4, fixed_abs, tag = 'smem constant byte address 0x4 - core index']
  #allocation1 [shape = 'u32[144,128]{1,0:T(1,128)}', space=vmem, size = 0x12000, scoped, tag = 'internal scratch']
  %s0 = inlined_call_operand.vmem [shape: bf16[1,128], index: 0, kind: input, shape index: {}]
  %s1 = inlined_call_operand.hbm [shape: bf16[128,256], index: 1, kind: input, shape index: {}]
  %s2 = inlined_call_operand.vmem [shape: f32[1,256], index: 2, kind: input, shape index: {}]
  %s3 = inlined_call_operand.hbm [shape: bf16[256,128], index: 3, kind: input, shape index: {}]
  %s4 = inlined_call_operand.vmem [shape: f32[1,128], index: 4, kind: input, shape index: {}]
  %s5 = inlined_call_operand.vmem [shape: bf16[128,8], index: 5, kind: input, shape index: {}]
  %s6 = inlined_call_operand.vmem [shape: f32[1,8], index: 6, kind: input, shape index: {}]
  %s7 = inlined_call_operand.hbm [shape: f32[1,8], index: 7, kind: output, shape index: {}]
  %s8 = sld [smem:[#allocation0]]
  $region46: #{tpu_custom_call.1} parent=0
    _
  %s10 = ssub.s32 1, %s8
  %s11 = scalar_select 0, %s10, %s8
  $region1: #{tpu_custom_call.1} parent=0
    #allocation2 [shape = 'u8[65536]{0}', space=vmem, size = 0x10000, scoped, tag = 'input window, operand 1, single buffered']
    #allocation3 [shape = 's32[1]{0}', space=sflag, size = 0x4, scoped, tag = 'scoped memory for tpu_custom_call.1']
    #allocation4 [shape = 's32[1]{0}', space=sflag, size = 0x4, scoped, tag = 'scoped memory for tpu_custom_call.1']
    #allocation5 [shape = 'u8[65536]{0}', space=vmem, size = 0x10000, scoped, tag = 'input window, operand 3, single buffered']
    #allocation6 [shape = 's32[1]{0}', space=sflag, size = 0x4, scoped, tag = 'scoped memory for tpu_custom_call.1']
    #allocation7 [shape = 'u8[512]{0}', space=vmem, size = 0x400, scoped, tag = 'output window, operand 0, single buffered']
    %12 = vsyncpa [#allocation3], 0
    %13 = vsyncpa [#allocation6], 0
    %14 = vsyncpa [#allocation4], 0
    // Predicated region
    $region2: #{tpu_custom_call.1} parent=1 // pred_check
      _
    $region3: #{tpu_custom_call.1} parent=1 // pred_check_branch
      %16 = sbr.rel (0) target = $region5
    $region4: #{tpu_custom_call.1} parent=1 // pred_region
      _
    $region5: #{tpu_custom_call.1} parent=1 // pred_fallthru
      _
    // Predicated region
    $region6: #{tpu_custom_call.1} parent=1 // pred_check
      _
    $region7: #{tpu_custom_call.1} parent=1 // pred_check_branch
      %18 = sbr.rel (0) target = $region9
    $region8: #{tpu_custom_call.1} parent=1 // pred_region
      %s20 = ssub.s32 2048, 2048
      %21 = vsyncadd [#allocation3], %s20
      %s22 = sshll.u32 [#allocation2], 4
      %s23 = int_to_ptr.vmem [resolvable:$true] %s22
      %28 = dma.hbm_to_vmem [thread:$0]  %s1, 2048, %s23, [#allocation3], 128, 128, 8
    $region9: #{tpu_custom_call.1} parent=1 // pred_fallthru
      _
    // Predicated region
    $region10: #{tpu_custom_call.1} parent=1 // pred_check
      _
    $region11: #{tpu_custom_call.1} parent=1 // pred_check_branch
      %30 = sbr.rel (0) target = $region13
    $region12: #{tpu_custom_call.1} parent=1 // pred_region
      _
    $region13: #{tpu_custom_call.1} parent=1 // pred_fallthru
      _
    // Predicated region
    $region14: #{tpu_custom_call.1} parent=1 // pred_check
      _
    $region15: #{tpu_custom_call.1} parent=1 // pred_check_branch
      %32 = sbr.rel (0) target = $region17
    $region16: #{tpu_custom_call.1} parent=1 // pred_region
      %s34 = ssub.s32 2048, 2048
      %35 = vsyncadd [#allocation6], %s34
      %s36 = sshll.u32 [#allocation5], 4
      %s37 = int_to_ptr.vmem [resolvable:$true] %s36
      %42 = dma.hbm_to_vmem [thread:$0]  %s3, 2048, %s37, [#allocation6], 64, 64, 4
    $region17: #{tpu_custom_call.1} parent=1 // pred_fallthru
      _
    // Predicated region
    $region18: #{tpu_custom_call.1} parent=1 // pred_check
      _
    $region19: #{tpu_custom_call.1} parent=1 // pred_check_branch
      %44 = sbr.rel (0) target = $region21
    $region20: #{tpu_custom_call.1} parent=1 // pred_region
      _
    $region21: #{tpu_custom_call.1} parent=1 // pred_fallthru
      _
    // Predicated region
    $region22: #{tpu_custom_call.1} parent=1 // pred_check
      _
    $region23: #{tpu_custom_call.1} parent=1 // pred_check_branch
      %46 = sbr.rel (0) target = $region25
    $region24: #{tpu_custom_call.1} parent=1 // pred_region
      _
    $region25: #{tpu_custom_call.1} parent=1 // pred_fallthru
      _
    // Predicated region
    $region26: #{tpu_custom_call.1} parent=1 // pred_check
      _
    $region27: #{tpu_custom_call.1} parent=1 // pred_check_branch
      %48 = sbr.rel (0) target = $region29
    $region28: #{tpu_custom_call.1} parent=1 // pred_region
      _
    $region29: #{tpu_custom_call.1} parent=1 // pred_fallthru
      _
    // Predicated region
    $region30: #{tpu_custom_call.1} parent=1 // pred_check
      _
    $region31: #{tpu_custom_call.1} parent=1 // pred_check_branch
      %50 = sbr.rel (0) target = $region33
    $region32: #{tpu_custom_call.1} parent=1 // pred_region
      %51 = dma.done [#allocation3], 2048
    $region33: #{tpu_custom_call.1} parent=1 // pred_fallthru
      _
    // Predicated region
    $region34: #{tpu_custom_call.1} parent=1 // pred_check
      _
    $region35: #{tpu_custom_call.1} parent=1 // pred_check_branch
      %53 = sbr.rel (0) target = $region37
    $region36: #{tpu_custom_call.1} parent=1 // pred_region
      %54 = dma.done [#allocation6], 2048
    $region37: #{tpu_custom_call.1} parent=1 // pred_fallthru
      _
    %v56 = vld [vmem:[%s0] sm:$0x1]
    %v57 = vld [vmem:[#allocation2] sm:$0xff]
    %v58 = vld [vmem:[#allocation2 + $0x8] sm:$0xff]
    %v59 = vld [vmem:[#allocation2 + $0x10] sm:$0xff]
    %v60 = vld [vmem:[#allocation2 + $0x18] sm:$0xff]
    %v61 = vld [vmem:[#allocation2 + $0x20] sm:$0xff]
    %v62 = vld [vmem:[#allocation2 + $0x28] sm:$0xff]
    %v63 = vld [vmem:[#allocation2 + $0x30] sm:$0xff]
    %v64 = vld [vmem:[#allocation2 + $0x38] sm:$0xff]
    %v65 = vld [vmem:[#allocation2 + $0x40] sm:$0xff]
    %v66 = vld [vmem:[#allocation2 + $0x48] sm:$0xff]
    %v67 = vld [vmem:[#allocation2 + $0x50] sm:$0xff]
    %v68 = vld [vmem:[#allocation2 + $0x58] sm:$0xff]
    %v69 = vld [vmem:[#allocation2 + $0x60] sm:$0xff]
    %v70 = vld [vmem:[#allocation2 + $0x68] sm:$0xff]
    %v71 = vld [vmem:[#allocation2 + $0x70] sm:$0xff]
    %v72 = vld [vmem:[#allocation2 + $0x78] sm:$0xff]
    %v73 = vld [vmem:[%s2] sm:$0x3]
    %v90 = vunpack.c.l.b16 %v57
    %v91 = vunpack.c.h.b16 %v57
    %v92 = vunpack.c.l.b16 %v58
    %v93 = vunpack.c.h.b16 %v58
    %v94 = vunpack.c.l.b16 %v59
    %v95 = vunpack.c.h.b16 %v59
    %v96 = vunpack.c.l.b16 %v60
    %v97 = vunpack.c.h.b16 %v60
    %v98 = vunpack.c.l.b16 %v61
    %v99 = vunpack.c.h.b16 %v61
    %v100 = vunpack.c.l.b16 %v62
    %v101 = vunpack.c.h.b16 %v62
    %v102 = vunpack.c.l.b16 %v63
    %v103 = vunpack.c.h.b16 %v63
    %v104 = vunpack.c.l.b16 %v64
    %v105 = vunpack.c.h.b16 %v64
    %v106 = vunpack.c.l.b16 %v65
    %v107 = vunpack.c.h.b16 %v65
    %v108 = vunpack.c.l.b16 %v66
    %v109 = vunpack.c.h.b16 %v66
    %v110 = vunpack.c.l.b16 %v67
    %v111 = vunpack.c.h.b16 %v67
    %v112 = vunpack.c.l.b16 %v68
    %v113 = vunpack.c.h.b16 %v68
    %v114 = vunpack.c.l.b16 %v69
    %v115 = vunpack.c.h.b16 %v69
    %v116 = vunpack.c.l.b16 %v70
    %v117 = vunpack.c.h.b16 %v70
    %v118 = vunpack.c.l.b16 %v71
    %v119 = vunpack.c.h.b16 %v71
    %v120 = vunpack.c.l.b16 %v72
    %v121 = vunpack.c.h.b16 %v72
    %v122 = vpack.c.b16 %v92, %v90
    %v123 = vpack.c.b16 %v93, %v91
    %v124 = vpack.c.b16 %v96, %v94
    %v125 = vpack.c.b16 %v97, %v95
    %v126 = vpack.c.b16 %v100, %v98
    %v127 = vpack.c.b16 %v101, %v99
    %v128 = vpack.c.b16 %v104, %v102
    %v129 = vpack.c.b16 %v105, %v103
    %v130 = vpack.c.b16 %v108, %v106
    %v131 = vpack.c.b16 %v109, %v107
    %v132 = vpack.c.b16 %v112, %v110
    %v133 = vpack.c.b16 %v113, %v111
    %v134 = vpack.c.b16 %v116, %v114
    %v135 = vpack.c.b16 %v117, %v115
    %v136 = vpack.c.b16 %v120, %v118
    %v137 = vpack.c.b16 %v121, %v119
    %v155 = vlaneseq
    %v156 = vshrl.u32 %v155, 7
    %v157 = vsub.s32 0, %v156
    %v158 = vrot.slane %v73, %v157
    %v159 = vlaneseq
    %v160 = vshrl.u32 %v159, 7
    %v161 = vsub.s32 1, %v160
    %v162 = vrot.slane %v73, %v161
    %165 = vmatprep.subr.bf16.mxu0 %v123
    %166 = vmatpush1.bf16.msra.mxu0 %v122
    %167 = vmatprep.subr.bf16.mxu0 %v125
    %168 = vmatpush1.bf16.msra.mxu0 %v124
    %169 = vmatprep.subr.bf16.mxu0 %v127
    %170 = vmatpush1.bf16.msra.mxu0 %v126
    %171 = vmatprep.subr.bf16.mxu0 %v129
    %172 = vmatpush1.bf16.msra.mxu0 %v128
    %173 = vmatprep.subr.bf16.mxu0 %v131
    %174 = vmatpush1.bf16.msra.mxu0 %v130
    %175 = vmatprep.subr.bf16.mxu0 %v133
    %176 = vmatpush1.bf16.msra.mxu0 %v132
    %177 = vmatprep.subr.bf16.mxu0 %v135
    %178 = vmatpush1.bf16.msra.mxu0 %v134
    %179 = vmatprep.subr.bf16.mxu0 %v137
    %180 = vmatpush1.bf16.msra.mxu0 %v136
    %181 = vmatprep.subr.bf16.mxu0 0
    %182 = vmatpush1.bf16.msra.mxu0 0
    %183 = vmatprep.subr.bf16.mxu0 0
    %184 = vmatpush1.bf16.msra.mxu0 0
    %185 = vmatprep.subr.bf16.mxu0 0
    %186 = vmatpush1.bf16.msra.mxu0 0
    %187 = vmatprep.subr.bf16.mxu0 0
    %188 = vmatpush1.bf16.msra.mxu0 0
    %189 = vmatprep.subr.bf16.mxu0 0
    %190 = vmatpush1.bf16.msra.mxu0 0
    %191 = vmatprep.subr.bf16.mxu0 0
    %192 = vmatpush1.bf16.msra.mxu0 0
    %193 = vmatprep.subr.bf16.mxu0 0
    %194 = vmatpush1.bf16.msra.mxu0 0
    %195 = vmatprep.subr.bf16.mxu0 0
    %196 = vmatpush1.bf16.msra.mxu0 0
    %197 = vmatprep.mubr.bf16.mxu0 0
    %198 = vmatmul.mubr.bf16.gmra.mrb[0].mxu0 %v56
    %v199 = vpop.f32.mrb[0].mxu0
    %v200 = vadd.f32 %v158, %v199
    %v201 = vpop.f32.mrb[0].mxu0
    %v202 = vadd.f32 %v162, %v201
    %v203 = vpop.f32.mrb[0].mxu0
    %v204 = vpop.f32.mrb[0].mxu0
    %205 = vdwg.mxu0
    %v206 = vmax.f32 %v200, 0.0
    %v207 = vmax.f32 %v202, 0.0
    %v208 = vpack.c.bf16 %v206, %v206
    %v209 = vpack.c.bf16 %v207, %v207
    %v210 = vld [vmem:[#allocation5] sm:$0xf]
    %v211 = vld [vmem:[#allocation5 + $0x4] sm:$0xf]
    %v212 = vld [vmem:[#allocation5 + $0x8] sm:$0xf]
    %v213 = vld [vmem:[#allocation5 + $0xc] sm:$0xf]
    %v214 = vld [vmem:[#allocation5 + $0x10] sm:$0xf]
    %v215 = vld [vmem:[#allocation5 + $0x14] sm:$0xf]
    %v216 = vld [vmem:[#allocation5 + $0x18] sm:$0xf]
    %v217 = vld [vmem:[#allocation5 + $0x1c] sm:$0xf]
    %v218 = vld [vmem:[#allocation5 + $0x20] sm:$0xf]
    %v219 = vld [vmem:[#allocation5 + $0x24] sm:$0xf]
    %v220 = vld [vmem:[#allocation5 + $0x28] sm:$0xf]
    %v221 = vld [vmem:[#allocation5 + $0x2c] sm:$0xf]
    %v222 = vld [vmem:[#allocation5 + $0x30] sm:$0xf]
    %v223 = vld [vmem:[#allocation5 + $0x34] sm:$0xf]
    %v224 = vld [vmem:[#allocation5 + $0x38] sm:$0xf]
    %v225 = vld [vmem:[#allocation5 + $0x3c] sm:$0xf]
    %v226 = vld [vmem:[#allocation5 + $0x40] sm:$0xf]
    %v227 = vld [vmem:[#allocation5 + $0x44] sm:$0xf]
    %v228 = vld [vmem:[#allocation5 + $0x48] sm:$0xf]
    %v229 = vld [vmem:[#allocation5 + $0x4c] sm:$0xf]
    %v230 = vld [vmem:[#allocation5 + $0x50] sm:$0xf]
    %v231 = vld [vmem:[#allocation5 + $0x54] sm:$0xf]
    %v232 = vld [vmem:[#allocation5 + $0x58] sm:$0xf]
    %v233 = vld [vmem:[#allocation5 + $0x5c] sm:$0xf]
    %v234 = vld [vmem:[#allocation5 + $0x60] sm:$0xf]
    %v235 = vld [vmem:[#allocation5 + $0x64] sm:$0xf]
    %v236 = vld [vmem:[#allocation5 + $0x68] sm:$0xf]
    %v237 = vld [vmem:[#allocation5 + $0x6c] sm:$0xf]
    %v238 = vld [vmem:[#allocation5 + $0x70] sm:$0xf]
    %v239 = vld [vmem:[#allocation5 + $0x74] sm:$0xf]
    %v240 = vld [vmem:[#allocation5 + $0x78] sm:$0xf]
    %v241 = vld [vmem:[#allocation5 + $0x7c] sm:$0xf]
    %v242 = vld [vmem:[%s4] sm:$0x1]
    %v275 = vunpack.c.l.b16 %v210
    %v276 = vunpack.c.l.b16 %v211
    %v277 = vunpack.c.l.b16 %v212
    %v278 = vunpack.c.l.b16 %v213
    %v279 = vunpack.c.l.b16 %v214
    %v280 = vunpack.c.l.b16 %v215
    %v281 = vunpack.c.l.b16 %v216
    %v282 = vunpack.c.l.b16 %v217
    %v283 = vunpack.c.l.b16 %v218
    %v284 = vunpack.c.l.b16 %v219
    %v285 = vunpack.c.l.b16 %v220
    %v286 = vunpack.c.l.b16 %v221
    %v287 = vunpack.c.l.b16 %v222
    %v288 = vunpack.c.l.b16 %v223
    %v289 = vunpack.c.l.b16 %v224
    %v290 = vunpack.c.l.b16 %v225
    %v291 = vunpack.c.l.b16 %v226
    %v292 = vunpack.c.l.b16 %v227
    %v293 = vunpack.c.l.b16 %v228
    %v294 = vunpack.c.l.b16 %v229
    %v295 = vunpack.c.l.b16 %v230
    %v296 = vunpack.c.l.b16 %v231
    %v297 = vunpack.c.l.b16 %v232
    %v298 = vunpack.c.l.b16 %v233
    %v299 = vunpack.c.l.b16 %v234
    %v300 = vunpack.c.l.b16 %v235
    %v301 = vunpack.c.l.b16 %v236
    %v302 = vunpack.c.l.b16 %v237
    %v303 = vunpack.c.l.b16 %v238
    %v304 = vunpack.c.l.b16 %v239
    %v305 = vunpack.c.l.b16 %v240
    %v306 = vunpack.c.l.b16 %v241
    %v307 = vpack.c.b16 %v276, %v275
    %v308 = vpack.c.b16 %v278, %v277
    %v309 = vpack.c.b16 %v280, %v279
    %v310 = vpack.c.b16 %v282, %v281
    %v311 = vpack.c.b16 %v284, %v283
    %v312 = vpack.c.b16 %v286, %v285
    %v313 = vpack.c.b16 %v288, %v287
    %v314 = vpack.c.b16 %v290, %v289
    %v315 = vpack.c.b16 %v292, %v291
    %v316 = vpack.c.b16 %v294, %v293
    %v317 = vpack.c.b16 %v296, %v295
    %v318 = vpack.c.b16 %v298, %v297
    %v319 = vpack.c.b16 %v300, %v299
    %v320 = vpack.c.b16 %v302, %v301
    %v321 = vpack.c.b16 %v304, %v303
    %v322 = vpack.c.b16 %v306, %v305
    %339 = vmatprep.subr.bf16.mxu0 0
    %340 = vmatpush1.bf16.msra.mxu0 %v307
    %341 = vmatprep.subr.bf16.mxu0 0
    %342 = vmatpush1.bf16.msra.mxu0 %v308
    %343 = vmatprep.subr.bf16.mxu0 0
    %344 = vmatpush1.bf16.msra.mxu0 %v309
    %345 = vmatprep.subr.bf16.mxu0 0
    %346 = vmatpush1.bf16.msra.mxu0 %v310
    %347 = vmatprep.subr.bf16.mxu0 0
    %348 = vmatpush1.bf16.msra.mxu0 %v311
    %349 = vmatprep.subr.bf16.mxu0 0
    %350 = vmatpush1.bf16.msra.mxu0 %v312
    %351 = vmatprep.subr.bf16.mxu0 0
    %352 = vmatpush1.bf16.msra.mxu0 %v313
    %353 = vmatprep.subr.bf16.mxu0 0
    %354 = vmatpush1.bf16.msra.mxu0 %v314
    %355 = vmatprep.subr.bf16.mxu0 0
    %356 = vmatpush1.bf16.msra.mxu0 %v315
    %357 = vmatprep.subr.bf16.mxu0 0
    %358 = vmatpush1.bf16.msra.mxu0 %v316
    %359 = vmatprep.subr.bf16.mxu0 0
    %360 = vmatpush1.bf16.msra.mxu0 %v317
    %361 = vmatprep.subr.bf16.mxu0 0
    %362 = vmatpush1.bf16.msra.mxu0 %v318
    %363 = vmatprep.subr.bf16.mxu0 0
    %364 = vmatpush1.bf16.msra.mxu0 %v319
    %365 = vmatprep.subr.bf16.mxu0 0
    %366 = vmatpush1.bf16.msra.mxu0 %v320
    %367 = vmatprep.subr.bf16.mxu0 0
    %368 = vmatpush1.bf16.msra.mxu0 %v321
    %369 = vmatprep.subr.bf16.mxu0 0
    %370 = vmatpush1.bf16.msra.mxu0 %v322
    %371 = vmatprep.mubr.bf16.mxu0 %v209
    %372 = vmatmul.mubr.bf16.gmra.mrb[0].mxu0 %v208
    %v373 = vpop.f32.mrb[0].mxu0
    %v374 = vadd.f32 %v242, %v373
    %v375 = vpop.f32.mrb[0].mxu0
    %v376 = vpop.f32.mrb[0].mxu0
    %v377 = vpop.f32.mrb[0].mxu0
    %378 = vdwg.mxu0
    %v379 = vmax.f32 %v374, 0.0
    %v380 = vpack.c.bf16 %v379, %v379
    %v381 = vld [vmem:[%s5] sm:$0xf]
    %v382 = vld [vmem:[%s5 + $0x4] sm:$0xf]
    %v383 = vld [vmem:[%s5 + $0x8] sm:$0xf]
    %v384 = vld [vmem:[%s5 + $0xc] sm:$0xf]
    %v385 = vld [vmem:[%s5 + $0x10] sm:$0xf]
    %v386 = vld [vmem:[%s5 + $0x14] sm:$0xf]
    %v387 = vld [vmem:[%s5 + $0x18] sm:$0xf]
    %v388 = vld [vmem:[%s5 + $0x1c] sm:$0xf]
    %v389 = vld [vmem:[%s5 + $0x20] sm:$0xf]
    %v390 = vld [vmem:[%s5 + $0x24] sm:$0xf]
    %v391 = vld [vmem:[%s5 + $0x28] sm:$0xf]
    %v392 = vld [vmem:[%s5 + $0x2c] sm:$0xf]
    %v393 = vld [vmem:[%s5 + $0x30] sm:$0xf]
    %v394 = vld [vmem:[%s5 + $0x34] sm:$0xf]
    %v395 = vld [vmem:[%s5 + $0x38] sm:$0xf]
    %v396 = vld [vmem:[%s5 + $0x3c] sm:$0xf]
    %v397 = vld [vmem:[%s6] sm:$0x1]
    %v414 = vunpack.c.l.b16 %v381
    %v415 = vunpack.c.l.b16 %v382
    %v416 = vunpack.c.l.b16 %v383
    %v417 = vunpack.c.l.b16 %v384
    %v418 = vunpack.c.l.b16 %v385
    %v419 = vunpack.c.l.b16 %v386
    %v420 = vunpack.c.l.b16 %v387
    %v421 = vunpack.c.l.b16 %v388
    %v422 = vunpack.c.l.b16 %v389
    %v423 = vunpack.c.l.b16 %v390
    %v424 = vunpack.c.l.b16 %v391
    %v425 = vunpack.c.l.b16 %v392
    %v426 = vunpack.c.l.b16 %v393
    %v427 = vunpack.c.l.b16 %v394
    %v428 = vunpack.c.l.b16 %v395
    %v429 = vunpack.c.l.b16 %v396
    %v430 = vpack.c.b16 %v415, %v414
    %v431 = vpack.c.b16 %v417, %v416
    %v432 = vpack.c.b16 %v419, %v418
    %v433 = vpack.c.b16 %v421, %v420
    %v434 = vpack.c.b16 %v423, %v422
    %v435 = vpack.c.b16 %v425, %v424
    %v436 = vpack.c.b16 %v427, %v426
    %v437 = vpack.c.b16 %v429, %v428
    %446 = vmatprep.subr.bf16.mxu0 0
    %447 = vmatpush1.bf16.msra.mxu0 %v430
    %448 = vmatprep.subr.bf16.mxu0 0
    %449 = vmatpush1.bf16.msra.mxu0 %v431
    %450 = vmatprep.subr.bf16.mxu0 0
    %451 = vmatpush1.bf16.msra.mxu0 %v432
    %452 = vmatprep.subr.bf16.mxu0 0
    %453 = vmatpush1.bf16.msra.mxu0 %v433
    %454 = vmatprep.subr.bf16.mxu0 0
    %455 = vmatpush1.bf16.msra.mxu0 %v434
    %456 = vmatprep.subr.bf16.mxu0 0
    %457 = vmatpush1.bf16.msra.mxu0 %v435
    %458 = vmatprep.subr.bf16.mxu0 0
    %459 = vmatpush1.bf16.msra.mxu0 %v436
    %460 = vmatprep.subr.bf16.mxu0 0
    %461 = vmatpush1.bf16.msra.mxu0 %v437
    %462 = vmatprep.subr.bf16.mxu0 0
    %463 = vmatpush1.bf16.msra.mxu0 0
    %464 = vmatprep.subr.bf16.mxu0 0
    %465 = vmatpush1.bf16.msra.mxu0 0
    %466 = vmatprep.subr.bf16.mxu0 0
    %467 = vmatpush1.bf16.msra.mxu0 0
    %468 = vmatprep.subr.bf16.mxu0 0
    %469 = vmatpush1.bf16.msra.mxu0 0
    %470 = vmatprep.subr.bf16.mxu0 0
    %471 = vmatpush1.bf16.msra.mxu0 0
    %472 = vmatprep.subr.bf16.mxu0 0
    %473 = vmatpush1.bf16.msra.mxu0 0
    %474 = vmatprep.subr.bf16.mxu0 0
    %475 = vmatpush1.bf16.msra.mxu0 0
    %476 = vmatprep.subr.bf16.mxu0 0
    %477 = vmatpush1.bf16.msra.mxu0 0
    %478 = vmatprep.mubr.bf16.mxu0 0
    %479 = vmatmul.mubr.bf16.gmra.mrb[0].mxu0 %v380
    %v480 = vpop.f32.mrb[0].mxu0
    %v481 = vadd.f32 %v397, %v480
    %v482 = vpop.f32.mrb[0].mxu0
    %v483 = vpop.f32.mrb[0].mxu0
    %v484 = vpop.f32.mrb[0].mxu0
    %485 = vdwg.mxu0
    %vm486 = vcmask 57344
    %487 = vst.msk [vmem:[#allocation7] sm:$0x1] %vm486, %v481
    // Predicated region
    $region38: #{tpu_custom_call.1} parent=1 // pred_check
      _
    $region39: #{tpu_custom_call.1} parent=1 // pred_check_branch
      %489 = sbr.rel (0) target = $region41
    $region40: #{tpu_custom_call.1} parent=1 // pred_region
      %s491 = ssub.s32 16, 16
      %492 = vsyncadd [#allocation4], %s491
      %s494 = sshll.u32 [#allocation7], 4
      %s495 = int_to_ptr.vmem [resolvable:$true] %s494
      %497 = dma.vmem_to_hbm [thread:$0]  %s495, 16, %s7, [#allocation4]
    $region41: #{tpu_custom_call.1} parent=1 // pred_fallthru
      _
    // Predicated region
    $region42: #{tpu_custom_call.1} parent=1 // pred_check
      _
    $region43: #{tpu_custom_call.1} parent=1 // pred_check_branch
      %499 = sbr.rel (0) target = $region45
    $region44: #{tpu_custom_call.1} parent=1 // pred_region
      %500 = dma.done [#allocation4], 16
    $region45: #{tpu_custom_call.1} parent=1 // pred_fallthru
      _
    %501 = vsyncpa [#allocation3], 1
    %502 = vsyncpa [#allocation6], 1
    %503 = vsyncpa [#allocation4], 1

</llo_original>
